<compile_context>
chip_gen: v6e
topology: v6e:2x2x1
jax: 0.10.0
libtpu: 0.0.40
codegen_flags: <defaults>
</compile_context>

<pallas_src>
import math
from functools import partial

import jax
import jax.numpy as jnp
from jax.experimental import pallas as pl
from jax.experimental.pallas import tpu as pltpu


def _round_up(x, m):
    return (x + m - 1) // m * m


# --------------------------------------------------------------------------
# Fused path: one pallas_call, projection result persisted in VMEM scratch.
# --------------------------------------------------------------------------
def _fused_gcn_kernel(x_ref, w_ref, adj_ref, bias_ref, o_ref, support_ref):
    # x_ref:       (Np, in_fp)     bf16, resident (same block every step)
    # w_ref:       (in_fp, out_fp) bf16, resident
    # adj_ref:     (tm, Np)        bf16, row tile i
    # bias_ref:    (1, out_fp)     f32,  resident
    # support_ref: (Np, out_fp)    bf16 scratch, computed once at i == 0
    i = pl.program_id(0)

    @pl.when(i == 0)
    def _():
        support_ref[...] = jnp.dot(
            x_ref[...], w_ref[...], preferred_element_type=jnp.float32
        ).astype(jnp.bfloat16)

    acc = jnp.dot(
        adj_ref[...], support_ref[...], preferred_element_type=jnp.float32
    )
    o_ref[...] = (acc + bias_ref[...].astype(jnp.float32)).astype(o_ref.dtype)


def _fused_vmem_estimate(N, in_f, out_f, tm, out_bytes):
    Np = _round_up(N, 128)
    in_fp = _round_up(in_f, 128)
    out_fp = _round_up(out_f, 128)
    x_b = Np * in_fp * 2
    w_b = in_fp * out_fp * 2
    adj_b = tm * Np * 2
    bias_b = 8 * out_fp * 4
    sup_b = Np * out_fp * 2
    out_b = tm * out_fp * out_bytes
    # BlockSpec double-buffers every input / output block.
    return 2 * (x_b + w_b + adj_b + bias_b + out_b) + sup_b


def _fused_gcn(x, adj, weight, bias, out_dtype, *, tm):
    N, in_f = x.shape
    out_f = weight.shape[1]

    Np = _round_up(N, 128)          # contraction dim (adj cols == support rows)
    Mp = _round_up(N, tm)           # output row dim
    in_fp = _round_up(in_f, 128)
    out_fp = _round_up(out_f, 128)

    x_p = jnp.pad(x, ((0, Np - N), (0, in_fp - in_f))).astype(jnp.bfloat16)
    w_p = jnp.pad(
        weight, ((0, in_fp - in_f), (0, out_fp - out_f))
    ).astype(jnp.bfloat16)
    adj_p = jnp.pad(adj, ((0, Mp - N), (0, Np - N))).astype(jnp.bfloat16)
    bias_p = jnp.pad(
        bias.reshape(1, out_f), ((0, 0), (0, out_fp - out_f))
    ).astype(jnp.float32)

    out = pl.pallas_call(
        _fused_gcn_kernel,
        out_shape=jax.ShapeDtypeStruct((Mp, out_fp), out_dtype),
        grid_spec=pltpu.PrefetchScalarGridSpec(
            num_scalar_prefetch=0,
            grid=(Mp // tm,),
            in_specs=[
                pl.BlockSpec((Np, in_fp), lambda i: (0, 0)),      # x (resident)
                pl.BlockSpec((in_fp, out_fp), lambda i: (0, 0)),  # W (resident)
                pl.BlockSpec((tm, Np), lambda i: (i, 0)),         # adj row tile
                pl.BlockSpec((1, out_fp), lambda i: (0, 0)),      # bias (resident)
            ],
            out_specs=pl.BlockSpec((tm, out_fp), lambda i: (i, 0)),
            scratch_shapes=[pltpu.VMEM((Np, out_fp), jnp.bfloat16)],
        ),
        compiler_params=pltpu.CompilerParams(
            # Row-tile axis must run sequentially: the support scratch computed
            # at i == 0 is reused by every later iteration.
            dimension_semantics=("arbitrary",),
            vmem_limit_bytes=40 * 1024 * 1024,
        ),
    )(x_p, w_p, adj_p, bias_p)
    return out[:N, :out_f]


# --------------------------------------------------------------------------
# General tiled matmul(+bias) fallback for large graphs.
# --------------------------------------------------------------------------
def _matmul_bias_kernel(a_ref, b_ref, bias_ref, o_ref, acc_ref):
    """o = a @ b + bias, accumulated in f32 over the k (last) grid axis."""
    k = pl.program_id(2)

    @pl.when(k == 0)
    def _():
        acc_ref[...] = jnp.zeros_like(acc_ref)

    acc_ref[...] += jnp.dot(
        a_ref[...], b_ref[...], preferred_element_type=jnp.float32
    )

    @pl.when(k == pl.num_programs(2) - 1)
    def _():
        o_ref[...] = (acc_ref[...] + bias_ref[...].astype(jnp.float32)).astype(
            o_ref.dtype
        )


def _pick_tile(dim, desired):
    # Largest 128-multiple <= desired that does not exceed the 128-padded dim.
    return max(128, min(desired, _round_up(dim, 128)))


def _tiled_matmul(a, b, bias, out_dtype, *, tm=256, tn=256, tk=512):
    """Pallas tiled (a @ b + bias): bf16 MXU operands, f32 accumulation."""
    M, K = a.shape
    K2, N = b.shape
    assert K == K2

    tm = _pick_tile(M, tm)
    tn = _pick_tile(N, tn)
    tk = _pick_tile(K, tk)
    Mp, Kp, Np = _round_up(M, tm), _round_up(K, tk), _round_up(N, tn)

    a_p = jnp.pad(a, ((0, Mp - M), (0, Kp - K))).astype(jnp.bfloat16)
    b_p = jnp.pad(b, ((0, Kp - K), (0, Np - N))).astype(jnp.bfloat16)
    bias_p = jnp.pad(bias.reshape(1, N), ((0, 0), (0, Np - N))).astype(jnp.float32)

    grid = (Mp // tm, Np // tn, Kp // tk)

    out = pl.pallas_call(
        _matmul_bias_kernel,
        out_shape=jax.ShapeDtypeStruct((Mp, Np), out_dtype),
        grid_spec=pltpu.PrefetchScalarGridSpec(
            num_scalar_prefetch=0,
            grid=grid,
            in_specs=[
                pl.BlockSpec((tm, tk), lambda i, j, k: (i, k)),
                pl.BlockSpec((tk, tn), lambda i, j, k: (k, j)),
                pl.BlockSpec((1, tn), lambda i, j, k: (0, j)),
            ],
            out_specs=pl.BlockSpec((tm, tn), lambda i, j, k: (i, j)),
            scratch_shapes=[pltpu.VMEM((tm, tn), jnp.float32)],
        ),
        compiler_params=pltpu.CompilerParams(
            # Reduction axis last; row/col axes independent -> megacore-shardable.
            dimension_semantics=("parallel", "parallel", "arbitrary"),
            vmem_limit_bytes=32 * 1024 * 1024,
        ),
    )(a_p, b_p, bias_p)
    return out[:M, :N]


# --------------------------------------------------------------------------
# Public forward.
# --------------------------------------------------------------------------
@partial(jax.jit, static_argnames=("force_tiled",))
def gcn_forward(x, adj, weight, bias, *, force_tiled=False):
    """output = adj @ (x @ weight) + bias   (GraphConvolution.forward)."""
    n, in_f = x.shape
    out_f = weight.shape[1]
    assert adj.shape == (n, n)

    if bias is None:
        bias = jnp.zeros((out_f,), jnp.float32)

    out_dtype = x.dtype
    out_bytes = jnp.dtype(out_dtype).itemsize

    # Fused single-kernel path when everything fits comfortably in VMEM.
    tm_fused = min(256, _round_up(n, 128))
    fits = _fused_vmem_estimate(n, in_f, out_f, tm_fused, out_bytes) <= 24 * 1024 * 1024

    if fits and not force_tiled:
        return _fused_gcn(x, adj, weight, bias, out_dtype, tm=tm_fused)

    # Large-graph fallback: two independent tiled matmuls, order chosen so the
    # N^2 aggregation runs over the narrower feature width.
    if out_f <= in_f:
        support = _tiled_matmul(
            x, weight, jnp.zeros((out_f,), jnp.float32), jnp.bfloat16
        )
        out = _tiled_matmul(adj, support, bias, out_dtype)
    else:
        agg = _tiled_matmul(adj, x, jnp.zeros((in_f,), jnp.float32), jnp.bfloat16)
        out = _tiled_matmul(agg, weight, bias, out_dtype)
    return out


def init_gcn_params(key, in_features, out_features, dtype=jnp.float32):
    """Deterministic re-implementation of GraphConvolution.reset_parameters."""
    stdv = 1.0 / math.sqrt(out_features)
    k_w, k_b = jax.random.split(key)
    weight = jax.random.uniform(
        k_w, (in_features, out_features), dtype=dtype, minval=-stdv, maxval=stdv
    )
    bias = jax.random.uniform(
        k_b, (out_features,), dtype=dtype, minval=-stdv, maxval=stdv
    )
    return weight, bias


if __name__ == "__main__":
    key = jax.random.PRNGKey(0)
    k_x, k_adj, k_p = jax.random.split(key, 3)

    # Deliberately non-tile-aligned sizes to exercise the padding path.
    N = 200        # number of graph nodes
    IN_F = 48      # in_features
    OUT_F = 32     # out_features

    x = jax.random.normal(k_x, (N, IN_F), dtype=jnp.float32)

    # Dense, row-normalized random adjacency with self-loops.
    # TODO(synk): torch.spmm is sparse; here adj is treated as a dense matmul.
    adj_raw = (jax.random.uniform(k_adj, (N, N)) < 0.1).astype(jnp.float32)
    adj_raw = adj_raw + jnp.eye(N, dtype=jnp.float32)
    adj = adj_raw / jnp.sum(adj_raw, axis=1, keepdims=True)

    weight, bias = init_gcn_params(k_p, IN_F, OUT_F)

    # Reference (same math as the PyTorch forward), plain f32 JAX.
    ref = adj @ (x @ weight) + bias[None, :]

    # Fused single-kernel path (default for small graphs).
    out_fused = jax.block_until_ready(gcn_forward(x, adj, weight, bias))
    assert out_fused.shape == (N, OUT_F)
    assert jnp.allclose(out_fused, ref, atol=5e-2, rtol=5e-2), float(
        jnp.max(jnp.abs(out_fused - ref))
    )

    # Tiled fallback path (what large graphs would take).
    out_tiled = jax.block_until_ready(
        gcn_forward(x, adj, weight, bias, force_tiled=True)
    )
    assert out_tiled.shape == (N, OUT_F)
    assert jnp.allclose(out_tiled, ref, atol=5e-2, rtol=5e-2), float(
        jnp.max(jnp.abs(out_tiled - ref))
    )

    print("KERNEL_OK")
</pallas_src>

<mosaic_0001>
module attributes {stable_mosaic.version = 11 : i64} {
  func.func @_fused_gcn_kernel(%arg0: i32, %arg1: memref<256x128xbf16, #tpu.memory_space<vmem>>, %arg2: memref<128x128xbf16, #tpu.memory_space<vmem>>, %arg3: memref<256x256xbf16, #tpu.memory_space<vmem>>, %arg4: memref<1x128xf32, #tpu.memory_space<vmem>>, %arg5: memref<256x128xf32, #tpu.memory_space<vmem>>, %arg6: memref<256x128xbf16, #tpu.memory_space<vmem>>) attributes {dimension_semantics = [#tpu.dimension_semantics<arbitrary>], iteration_bounds = array<i64: 1>, scalar_prefetch = 0 : i64, scratch_operands = 1 : i64, tpu.core_type = #tpu.core_type<tc>, window_params = [{pipeline_mode = #tpu.pipeline_mode<synchronous>, transform_indices = @transform_0, window_bounds = array<i64: 256, 128>}, {pipeline_mode = #tpu.pipeline_mode<synchronous>, transform_indices = @transform_1, window_bounds = array<i64: 128, 128>}, {transform_indices = @transform_2, window_bounds = array<i64: 256, 256>}, {pipeline_mode = #tpu.pipeline_mode<synchronous>, transform_indices = @transform_3, window_bounds = array<i64: 1, 128>}, {transform_indices = @transform_4, window_bounds = array<i64: 256, 128>}]} {
    %c0_i32 = arith.constant 0 : i32
    %0 = arith.cmpi eq, %arg0, %c0_i32 : i32
    %1 = arith.extui %0 : i1 to i32
    %c0_i32_0 = arith.constant 0 : i32
    %2 = arith.cmpi ne, %1, %c0_i32_0 : i32
    scf.if %2 {
      %c0_8 = arith.constant 0 : index
      %c0_9 = arith.constant 0 : index
      %10 = vector.load %arg1[%c0_8, %c0_9] : memref<256x128xbf16, #tpu.memory_space<vmem>>, vector<256x128xbf16>
      %c0_10 = arith.constant 0 : index
      %c0_11 = arith.constant 0 : index
      %11 = vector.load %arg2[%c0_10, %c0_11] : memref<128x128xbf16, #tpu.memory_space<vmem>>, vector<128x128xbf16>
      %cst_12 = arith.constant dense<0.000000e+00> : vector<256x128xf32>
      %12 = tpu.matmul %10, %11, %cst_12 {dimension_numbers = #tpu.dot_dimension_numbers<[1], [0], [0], [1], [0, 0, 1, 1], [], []>} : vector<256x128xbf16>, vector<128x128xbf16>, vector<256x128xf32> -> vector<256x128xf32>
      %13 = arith.truncf %12 : vector<256x128xf32> to vector<256x128xbf16>
      %c0_13 = arith.constant 0 : index
      %c0_14 = arith.constant 0 : index
      %14 = vector.load %arg6[%c0_13, %c0_14] : memref<256x128xbf16, #tpu.memory_space<vmem>>, vector<256x128xbf16>
      tpu.vector_store %arg6[%c0_13, %c0_14], %13 {strides = array<i32>} : memref<256x128xbf16, #tpu.memory_space<vmem>>, vector<256x128xbf16>,
    } else {
    }
    %c0 = arith.constant 0 : index
    %c0_1 = arith.constant 0 : index
    %3 = vector.load %arg3[%c0, %c0_1] : memref<256x256xbf16, #tpu.memory_space<vmem>>, vector<256x256xbf16>
    %c0_2 = arith.constant 0 : index
    %c0_3 = arith.constant 0 : index
    %4 = vector.load %arg6[%c0_2, %c0_3] : memref<256x128xbf16, #tpu.memory_space<vmem>>, vector<256x128xbf16>
    %cst = arith.constant dense<0.000000e+00> : vector<256x128xf32>
    %5 = tpu.matmul %3, %4, %cst {dimension_numbers = #tpu.dot_dimension_numbers<[1], [0], [0], [1], [0, 0, 1, 1], [], []>} : vector<256x256xbf16>, vector<256x128xbf16>, vector<256x128xf32> -> vector<256x128xf32>
    %c0_4 = arith.constant 0 : index
    %c0_5 = arith.constant 0 : index
    %6 = vector.load %arg4[%c0_4, %c0_5] : memref<1x128xf32, #tpu.memory_space<vmem>>, vector<1x128xf32>
    %7 = vector.broadcast %6 : vector<1x128xf32> to vector<256x128xf32>
    %8 = arith.addf %5, %7 : vector<256x128xf32>
    %c0_6 = arith.constant 0 : index
    %c0_7 = arith.constant 0 : index
    %9 = vector.load %arg5[%c0_6, %c0_7] : memref<256x128xf32, #tpu.memory_space<vmem>>, vector<256x128xf32>
    tpu.vector_store %arg5[%c0_6, %c0_7], %8 {strides = array<i32>} : memref<256x128xf32, #tpu.memory_space<vmem>>, vector<256x128xf32>,
    return
  }
  func.func @transform_0(%arg0: i32) -> (i32, i32) {
    %c0_i32 = arith.constant 0 : i32
    %c0_i32_0 = arith.constant 0 : i32
    %c0_i32_1 = arith.constant 0 : i32
    return %c0_i32, %c0_i32_0 : i32, i32
  }
  func.func @transform_1(%arg0: i32) -> (i32, i32) {
    %c0_i32 = arith.constant 0 : i32
    %c0_i32_0 = arith.constant 0 : i32
    %c0_i32_1 = arith.constant 0 : i32
    return %c0_i32, %c0_i32_0 : i32, i32
  }
  func.func @transform_2(%arg0: i32) -> (i32, i32) {
    %c0_i32 = arith.constant 0 : i32
    %c0_i32_0 = arith.constant 0 : i32
    return %arg0, %c0_i32 : i32, i32
  }
  func.func @transform_3(%arg0: i32) -> (i32, i32) {
    %c0_i32 = arith.constant 0 : i32
    %c0_i32_0 = arith.constant 0 : i32
    %c0_i32_1 = arith.constant 0 : i32
    return %c0_i32, %c0_i32_0 : i32, i32
  }
  func.func @transform_4(%arg0: i32) -> (i32, i32) {
    %c0_i32 = arith.constant 0 : i32
    %c0_i32_0 = arith.constant 0 : i32
    return %arg0, %c0_i32 : i32, i32
  }
}

</mosaic_0001>

<llo_original>
// kernel: gcn_forward.1
$region0: #{gcn_forward.1}
  #allocation0 [shape = 'u32[]', space=smem, size = 0x4, offset = 0x4, fixed_abs, tag = 'smem constant byte address 0x4 - core index']
  #allocation1 [shape = 'u32[144,128]{1,0:T(1,128)}', space=vmem, size = 0x12000, scoped, tag = 'internal scratch']
  #allocation2 [shape = 'bf16[256,128]{1,0:T(8,128)(2,1)}', space=vmem, size = 0x10000, scoped, tag = 'scratch operand']
  %s0 = inlined_call_operand.vmem [shape: bf16[256,128], index: 0, kind: input, shape index: {}]
  %s1 = inlined_call_operand.vmem [shape: bf16[128,128], index: 1, kind: input, shape index: {}]
  %s2 = inlined_call_operand.vmem [shape: bf16[256,256], index: 2, kind: input, shape index: {}]
  %s3 = inlined_call_operand.vmem [shape: f32[1,128], index: 3, kind: input, shape index: {}]
  %s4 = inlined_call_operand.vmem [shape: f32[256,128], index: 4, kind: output, shape index: {}]
  %s5 = sld [smem:[#allocation0]]
  $region30: #{gcn_forward.1} parent=0
    _
  %s7 = ssub.s32 1, %s5
  %s8 = scalar_select 0, %s7, %s5
  // Predicated region
  $region2: #{gcn_forward.1} parent=0 // pred_check
    _
  $region3: #{gcn_forward.1} parent=0 // pred_check_branch
    %10 = sbr.rel (0) target = $region5
  $region4: #{gcn_forward.1} parent=0 // pred_region
    _
  $region5: #{gcn_forward.1} parent=0 // pred_fallthru
    _
  // Predicated region
  $region6: #{gcn_forward.1} parent=0 // pred_check
    _
  $region7: #{gcn_forward.1} parent=0 // pred_check_branch
    %12 = sbr.rel (0) target = $region9
  $region8: #{gcn_forward.1} parent=0 // pred_region
    _
  $region9: #{gcn_forward.1} parent=0 // pred_fallthru
    _
  // Predicated region
  $region10: #{gcn_forward.1} parent=0 // pred_check
    _
  $region11: #{gcn_forward.1} parent=0 // pred_check_branch
    %14 = sbr.rel (0) target = $region13
  $region12: #{gcn_forward.1} parent=0 // pred_region
    _
  $region13: #{gcn_forward.1} parent=0 // pred_fallthru
    _
  // Predicated region
  $region14: #{gcn_forward.1} parent=0 // pred_check
    _
  $region15: #{gcn_forward.1} parent=0 // pred_check_branch
    %16 = sbr.rel (0) target = $region17
  $region16: #{gcn_forward.1} parent=0 // pred_region
    _
  $region17: #{gcn_forward.1} parent=0 // pred_fallthru
    _
  %p18 = scmp.eq.s32.totalorder 0, 0
  // Predicated region
  $region18: #{gcn_forward.1} parent=0 // pred_check
    %p19 = pneg %p18
  $region19: #{gcn_forward.1} parent=0 // pred_check_branch
    %21 = sbr.rel (%p19) target = $region21
  $region20: #{gcn_forward.1} parent=0 // pred_region
    %v22 = vld [vmem:[%s0] sm:$0xf]
    %v23 = vld [vmem:[%s0 + $0x4] sm:$0xf]
    %v24 = vld [vmem:[%s0 + $0x8] sm:$0xf]
    %v25 = vld [vmem:[%s0 + $0xc] sm:$0xf]
    %v26 = vld [vmem:[%s0 + $0x10] sm:$0xf]
    %v27 = vld [vmem:[%s0 + $0x14] sm:$0xf]
    %v28 = vld [vmem:[%s0 + $0x18] sm:$0xf]
    %v29 = vld [vmem:[%s0 + $0x1c] sm:$0xf]
    %v30 = vld [vmem:[%s0 + $0x20] sm:$0xf]
    %v31 = vld [vmem:[%s0 + $0x24] sm:$0xf]
    %v32 = vld [vmem:[%s0 + $0x28] sm:$0xf]
    %v33 = vld [vmem:[%s0 + $0x2c] sm:$0xf]
    %v34 = vld [vmem:[%s0 + $0x30] sm:$0xf]
    %v35 = vld [vmem:[%s0 + $0x34] sm:$0xf]
    %v36 = vld [vmem:[%s0 + $0x38] sm:$0xf]
    %v37 = vld [vmem:[%s0 + $0x3c] sm:$0xf]
    %v38 = vld [vmem:[%s0 + $0x40] sm:$0xf]
    %v39 = vld [vmem:[%s0 + $0x44] sm:$0xf]
    %v40 = vld [vmem:[%s0 + $0x48] sm:$0xf]
    %v41 = vld [vmem:[%s0 + $0x4c] sm:$0xf]
    %v42 = vld [vmem:[%s0 + $0x50] sm:$0xf]
    %v43 = vld [vmem:[%s0 + $0x54] sm:$0xf]
    %v44 = vld [vmem:[%s0 + $0x58] sm:$0xf]
    %v45 = vld [vmem:[%s0 + $0x5c] sm:$0xf]
    %v46 = vld [vmem:[%s0 + $0x60] sm:$0xf]
    %v47 = vld [vmem:[%s0 + $0x64] sm:$0xf]
    %v48 = vld [vmem:[%s0 + $0x68] sm:$0xf]
    %v49 = vld [vmem:[%s0 + $0x6c] sm:$0xf]
    %v50 = vld [vmem:[%s0 + $0x70] sm:$0xf]
    %v51 = vld [vmem:[%s0 + $0x74] sm:$0xf]
    %v52 = vld [vmem:[%s0 + $0x78] sm:$0xf]
    %v53 = vld [vmem:[%s0 + $0x7c] sm:$0xf]
    %v54 = vld [vmem:[%s1] sm:$0xf]
    %v55 = vld [vmem:[%s1 + $0x4] sm:$0xf]
    %v56 = vld [vmem:[%s1 + $0x8] sm:$0xf]
    %v57 = vld [vmem:[%s1 + $0xc] sm:$0xf]
    %v58 = vld [vmem:[%s1 + $0x10] sm:$0xf]
    %v59 = vld [vmem:[%s1 + $0x14] sm:$0xf]
    %v60 = vld [vmem:[%s1 + $0x18] sm:$0xf]
    %v61 = vld [vmem:[%s1 + $0x1c] sm:$0xf]
    %v62 = vld [vmem:[%s1 + $0x20] sm:$0xf]
    %v63 = vld [vmem:[%s1 + $0x24] sm:$0xf]
    %v64 = vld [vmem:[%s1 + $0x28] sm:$0xf]
    %v65 = vld [vmem:[%s1 + $0x2c] sm:$0xf]
    %v66 = vld [vmem:[%s1 + $0x30] sm:$0xf]
    %v67 = vld [vmem:[%s1 + $0x34] sm:$0xf]
    %v68 = vld [vmem:[%s1 + $0x38] sm:$0xf]
    %v69 = vld [vmem:[%s1 + $0x3c] sm:$0xf]
    %v102 = vunpack.c.l.b16 %v22
    %v103 = vunpack.c.l.b16 %v23
    %v104 = vunpack.c.l.b16 %v24
    %v105 = vunpack.c.l.b16 %v25
    %v106 = vunpack.c.l.b16 %v26
    %v107 = vunpack.c.l.b16 %v27
    %v108 = vunpack.c.l.b16 %v28
    %v109 = vunpack.c.l.b16 %v29
    %v110 = vunpack.c.l.b16 %v30
    %v111 = vunpack.c.l.b16 %v31
    %v112 = vunpack.c.l.b16 %v32
    %v113 = vunpack.c.l.b16 %v33
    %v114 = vunpack.c.l.b16 %v34
    %v115 = vunpack.c.l.b16 %v35
    %v116 = vunpack.c.l.b16 %v36
    %v117 = vunpack.c.l.b16 %v37
    %v118 = vunpack.c.l.b16 %v38
    %v119 = vunpack.c.l.b16 %v39
    %v120 = vunpack.c.l.b16 %v40
    %v121 = vunpack.c.l.b16 %v41
    %v122 = vunpack.c.l.b16 %v42
    %v123 = vunpack.c.l.b16 %v43
    %v124 = vunpack.c.l.b16 %v44
    %v125 = vunpack.c.l.b16 %v45
    %v126 = vunpack.c.l.b16 %v46
    %v127 = vunpack.c.l.b16 %v47
    %v128 = vunpack.c.l.b16 %v48
    %v129 = vunpack.c.l.b16 %v49
    %v130 = vunpack.c.l.b16 %v50
    %v131 = vunpack.c.l.b16 %v51
    %v132 = vunpack.c.l.b16 %v52
    %v133 = vunpack.c.l.b16 %v53
    %v134 = vpack.c.b16 %v103, %v102
    %v135 = vpack.c.b16 %v105, %v104
    %v136 = vpack.c.b16 %v107, %v106
    %v137 = vpack.c.b16 %v109, %v108
    %v138 = vpack.c.b16 %v111, %v110
    %v139 = vpack.c.b16 %v113, %v112
    %v140 = vpack.c.b16 %v115, %v114
    %v141 = vpack.c.b16 %v117, %v116
    %v142 = vpack.c.b16 %v119, %v118
    %v143 = vpack.c.b16 %v121, %v120
    %v144 = vpack.c.b16 %v123, %v122
    %v145 = vpack.c.b16 %v125, %v124
    %v146 = vpack.c.b16 %v127, %v126
    %v147 = vpack.c.b16 %v129, %v128
    %v148 = vpack.c.b16 %v131, %v130
    %v149 = vpack.c.b16 %v133, %v132
    %v182 = vunpack.c.l.b16 %v54
    %v183 = vunpack.c.l.b16 %v55
    %v184 = vunpack.c.l.b16 %v56
    %v185 = vunpack.c.l.b16 %v57
    %v186 = vunpack.c.l.b16 %v58
    %v187 = vunpack.c.l.b16 %v59
    %v188 = vunpack.c.l.b16 %v60
    %v189 = vunpack.c.l.b16 %v61
    %v190 = vunpack.c.l.b16 %v62
    %v191 = vunpack.c.l.b16 %v63
    %v192 = vunpack.c.l.b16 %v64
    %v193 = vunpack.c.l.b16 %v65
    %v194 = vunpack.c.l.b16 %v66
    %v195 = vunpack.c.l.b16 %v67
    %v196 = vunpack.c.l.b16 %v68
    %v197 = vunpack.c.l.b16 %v69
    %v198 = vpack.c.b16 %v183, %v182
    %v199 = vpack.c.b16 %v185, %v184
    %v200 = vpack.c.b16 %v187, %v186
    %v201 = vpack.c.b16 %v189, %v188
    %v202 = vpack.c.b16 %v191, %v190
    %v203 = vpack.c.b16 %v193, %v192
    %v204 = vpack.c.b16 %v195, %v194
    %v205 = vpack.c.b16 %v197, %v196
    %214 = vmatprep.subr.bf16.mxu0 0
    %215 = vmatpush1.bf16.msra.mxu0 %v205
    %216 = vmatprep.subr.bf16.mxu0 0
    %217 = vmatpush1.bf16.msra.mxu0 %v204
    %218 = vmatprep.subr.bf16.mxu0 0
    %219 = vmatpush1.bf16.msra.mxu0 %v203
    %220 = vmatprep.subr.bf16.mxu0 0
    %221 = vmatpush1.bf16.msra.mxu0 %v202
    %222 = vmatprep.subr.bf16.mxu0 0
    %223 = vmatpush1.bf16.msra.mxu0 %v201
    %224 = vmatprep.subr.bf16.mxu0 0
    %225 = vmatpush1.bf16.msra.mxu0 %v200
    %226 = vmatprep.subr.bf16.mxu0 0
    %227 = vmatpush1.bf16.msra.mxu0 %v199
    %228 = vmatprep.subr.bf16.mxu0 0
    %229 = vmatpush1.bf16.msra.mxu0 %v198
    %230 = vmatprep.subr.bf16.mxu0 0
    %231 = vmatpush2.bf16.msra.mxu0 0
    %232 = vmatprep.subr.bf16.mxu0 0
    %233 = vmatpush2.bf16.msra.mxu0 0
    %234 = vmatprep.subr.bf16.mxu0 0
    %235 = vmatpush2.bf16.msra.mxu0 0
    %236 = vmatprep.subr.bf16.mxu0 0
    %237 = vmatpush2.bf16.msra.mxu0 0
    %238 = vmatprep.subr.bf16.mxu0 0
    %239 = vmatpush2.bf16.msra.mxu0 0
    %240 = vmatprep.subr.bf16.mxu0 0
    %241 = vmatpush2.bf16.msra.mxu0 0
    %242 = vmatprep.subr.bf16.mxu0 0
    %243 = vmatpush2.bf16.msra.mxu0 0
    %244 = vmatprep.subr.bf16.mxu0 0
    %245 = vmatpush2.bf16.msra.mxu0 0
    %246 = vmatprep.mubr.bf16.mxu0 0
    %247 = vmatmul.mubr.bf16.gmra.mxu0 %v134
    %v248 = vpop.f32.mrf.mxu0
    %v249 = vadd.f32 0.0, %v248
    %v250 = vpop.f32.mrf.mxu0
    %v251 = vpop.f32.mrf.mxu0
    %v252 = vadd.f32 0.0, %v251
    %v253 = vpop.f32.mrf.mxu0
    %254 = vmatprep.mubr.bf16.mxu0 0
    %255 = vmatmul.mubr.bf16.gmra.mxu0 %v135
    %v256 = vpop.f32.mrf.mxu0
    %v257 = vadd.f32 0.0, %v256
    %v258 = vpop.f32.mrf.mxu0
    %v259 = vpop.f32.mrf.mxu0
    %v260 = vadd.f32 0.0, %v259
    %v261 = vpop.f32.mrf.mxu0
    %262 = vmatprep.mubr.bf16.mxu0 0
    %263 = vmatmul.mubr.bf16.gmra.mxu0 %v136
    %v264 = vpop.f32.mrf.mxu0
    %v265 = vadd.f32 0.0, %v264
    %v266 = vpop.f32.mrf.mxu0
    %v267 = vpop.f32.mrf.mxu0
    %v268 = vadd.f32 0.0, %v267
    %v269 = vpop.f32.mrf.mxu0
    %270 = vmatprep.mubr.bf16.mxu0 0
    %271 = vmatmul.mubr.bf16.gmra.mxu0 %v137
    %v272 = vpop.f32.mrf.mxu0
    %v273 = vadd.f32 0.0, %v272
    %v274 = vpop.f32.mrf.mxu0
    %v275 = vpop.f32.mrf.mxu0
    %v276 = vadd.f32 0.0, %v275
    %v277 = vpop.f32.mrf.mxu0
    %278 = vmatprep.mubr.bf16.mxu0 0
    %279 = vmatmul.mubr.bf16.gmra.mxu0 %v138
    %v280 = vpop.f32.mrf.mxu0
    %v281 = vadd.f32 0.0, %v280
    %v282 = vpop.f32.mrf.mxu0
    %v283 = vpop.f32.mrf.mxu0
    %v284 = vadd.f32 0.0, %v283
    %v285 = vpop.f32.mrf.mxu0
    %286 = vmatprep.mubr.bf16.mxu0 0
    %287 = vmatmul.mubr.bf16.gmra.mxu0 %v139
    %v288 = vpop.f32.mrf.mxu0
    %v289 = vadd.f32 0.0, %v288
    %v290 = vpop.f32.mrf.mxu0
    %v291 = vpop.f32.mrf.mxu0
    %v292 = vadd.f32 0.0, %v291
    %v293 = vpop.f32.mrf.mxu0
    %294 = vmatprep.mubr.bf16.mxu0 0
    %295 = vmatmul.mubr.bf16.gmra.mxu0 %v140
    %v296 = vpop.f32.mrf.mxu0
    %v297 = vadd.f32 0.0, %v296
    %v298 = vpop.f32.mrf.mxu0
    %v299 = vpop.f32.mrf.mxu0
    %v300 = vadd.f32 0.0, %v299
    %v301 = vpop.f32.mrf.mxu0
    %302 = vmatprep.mubr.bf16.mxu0 0
    %303 = vmatmul.mubr.bf16.gmra.mxu0 %v141
    %v304 = vpop.f32.mrf.mxu0
    %v305 = vadd.f32 0.0, %v304
    %v306 = vpop.f32.mrf.mxu0
    %v307 = vpop.f32.mrf.mxu0
    %v308 = vadd.f32 0.0, %v307
    %v309 = vpop.f32.mrf.mxu0
    %310 = vmatprep.mubr.bf16.mxu0 0
    %311 = vmatmul.mubr.bf16.gmra.mxu0 %v142
    %v312 = vpop.f32.mrf.mxu0
    %v313 = vadd.f32 0.0, %v312
    %v314 = vpop.f32.mrf.mxu0
    %v315 = vpop.f32.mrf.mxu0
    %v316 = vadd.f32 0.0, %v315
    %v317 = vpop.f32.mrf.mxu0
    %318 = vmatprep.mubr.bf16.mxu0 0
    %319 = vmatmul.mubr.bf16.gmra.mxu0 %v143
    %v320 = vpop.f32.mrf.mxu0
    %v321 = vadd.f32 0.0, %v320
    %v322 = vpop.f32.mrf.mxu0
    %v323 = vpop.f32.mrf.mxu0
    %v324 = vadd.f32 0.0, %v323
    %v325 = vpop.f32.mrf.mxu0
    %326 = vmatprep.mubr.bf16.mxu0 0
    %327 = vmatmul.mubr.bf16.gmra.mxu0 %v144
    %v328 = vpop.f32.mrf.mxu0
    %v329 = vadd.f32 0.0, %v328
    %v330 = vpop.f32.mrf.mxu0
    %v331 = vpop.f32.mrf.mxu0
    %v332 = vadd.f32 0.0, %v331
    %v333 = vpop.f32.mrf.mxu0
    %334 = vmatprep.mubr.bf16.mxu0 0
    %335 = vmatmul.mubr.bf16.gmra.mxu0 %v145
    %v336 = vpop.f32.mrf.mxu0
    %v337 = vadd.f32 0.0, %v336
    %v338 = vpop.f32.mrf.mxu0
    %v339 = vpop.f32.mrf.mxu0
    %v340 = vadd.f32 0.0, %v339
    %v341 = vpop.f32.mrf.mxu0
    %342 = vmatprep.mubr.bf16.mxu0 0
    %343 = vmatmul.mubr.bf16.gmra.mxu0 %v146
    %v344 = vpop.f32.mrf.mxu0
    %v345 = vadd.f32 0.0, %v344
    %v346 = vpop.f32.mrf.mxu0
    %v347 = vpop.f32.mrf.mxu0
    %v348 = vadd.f32 0.0, %v347
    %v349 = vpop.f32.mrf.mxu0
    %350 = vmatprep.mubr.bf16.mxu0 0
    %351 = vmatmul.mubr.bf16.gmra.mxu0 %v147
    %v352 = vpop.f32.mrf.mxu0
    %v353 = vadd.f32 0.0, %v352
    %v354 = vpop.f32.mrf.mxu0
    %v355 = vpop.f32.mrf.mxu0
    %v356 = vadd.f32 0.0, %v355
    %v357 = vpop.f32.mrf.mxu0
    %358 = vmatprep.mubr.bf16.mxu0 0
    %359 = vmatmul.mubr.bf16.gmra.mxu0 %v148
    %v360 = vpop.f32.mrf.mxu0
    %v361 = vadd.f32 0.0, %v360
    %v362 = vpop.f32.mrf.mxu0
    %v363 = vpop.f32.mrf.mxu0
    %v364 = vadd.f32 0.0, %v363
    %v365 = vpop.f32.mrf.mxu0
    %366 = vmatprep.mubr.bf16.mxu0 0
    %367 = vmatmul.mubr.bf16.gmra.mxu0 %v149
    %v368 = vpop.f32.mrf.mxu0
    %v369 = vadd.f32 0.0, %v368
    %v370 = vpop.f32.mrf.mxu0
    %v371 = vpop.f32.mrf.mxu0
    %v372 = vadd.f32 0.0, %v371
    %v373 = vpop.f32.mrf.mxu0
    %374 = vdwg.mxu0
    %v375 = vpack.c.bf16 %v252, %v249
    %v376 = vpack.c.bf16 %v260, %v257
    %v377 = vpack.c.bf16 %v268, %v265
    %v378 = vpack.c.bf16 %v276, %v273
    %v379 = vpack.c.bf16 %v284, %v281
    %v380 = vpack.c.bf16 %v292, %v289
    %v381 = vpack.c.bf16 %v300, %v297
    %v382 = vpack.c.bf16 %v308, %v305
    %v383 = vpack.c.bf16 %v316, %v313
    %v384 = vpack.c.bf16 %v324, %v321
    %v385 = vpack.c.bf16 %v332, %v329
    %v386 = vpack.c.bf16 %v340, %v337
    %v387 = vpack.c.bf16 %v348, %v345
    %v388 = vpack.c.bf16 %v356, %v353
    %v389 = vpack.c.bf16 %v364, %v361
    %v390 = vpack.c.bf16 %v372, %v369
    %v407 = vunpack.c.l.b16 %v375
    %v408 = vunpack.c.h.b16 %v375
    %v409 = vunpack.c.l.b16 %v376
    %v410 = vunpack.c.h.b16 %v376
    %v411 = vunpack.c.l.b16 %v377
    %v412 = vunpack.c.h.b16 %v377
    %v413 = vunpack.c.l.b16 %v378
    %v414 = vunpack.c.h.b16 %v378
    %v415 = vunpack.c.l.b16 %v379
    %v416 = vunpack.c.h.b16 %v379
    %v417 = vunpack.c.l.b16 %v380
    %v418 = vunpack.c.h.b16 %v380
    %v419 = vunpack.c.l.b16 %v381
    %v420 = vunpack.c.h.b16 %v381
    %v421 = vunpack.c.l.b16 %v382
    %v422 = vunpack.c.h.b16 %v382
    %v423 = vunpack.c.l.b16 %v383
    %v424 = vunpack.c.h.b16 %v383
    %v425 = vunpack.c.l.b16 %v384
    %v426 = vunpack.c.h.b16 %v384
    %v427 = vunpack.c.l.b16 %v385
    %v428 = vunpack.c.h.b16 %v385
    %v429 = vunpack.c.l.b16 %v386
    %v430 = vunpack.c.h.b16 %v386
    %v431 = vunpack.c.l.b16 %v387
    %v432 = vunpack.c.h.b16 %v387
    %v433 = vunpack.c.l.b16 %v388
    %v434 = vunpack.c.h.b16 %v388
    %v435 = vunpack.c.l.b16 %v389
    %v436 = vunpack.c.h.b16 %v389
    %v437 = vunpack.c.l.b16 %v390
    %v438 = vunpack.c.h.b16 %v390
    %v439 = vpack.c.b16 %v407, %v407
    %v440 = vpack.c.b16 %v408, %v408
    %v441 = vpack.c.b16 %v409, %v409
    %v442 = vpack.c.b16 %v410, %v410
    %v443 = vpack.c.b16 %v411, %v411
    %v444 = vpack.c.b16 %v412, %v412
    %v445 = vpack.c.b16 %v413, %v413
    %v446 = vpack.c.b16 %v414, %v414
    %v447 = vpack.c.b16 %v415, %v415
    %v448 = vpack.c.b16 %v416, %v416
    %v449 = vpack.c.b16 %v417, %v417
    %v450 = vpack.c.b16 %v418, %v418
    %v451 = vpack.c.b16 %v419, %v419
    %v452 = vpack.c.b16 %v420, %v420
    %v453 = vpack.c.b16 %v421, %v421
    %v454 = vpack.c.b16 %v422, %v422
    %v455 = vpack.c.b16 %v423, %v423
    %v456 = vpack.c.b16 %v424, %v424
    %v457 = vpack.c.b16 %v425, %v425
    %v458 = vpack.c.b16 %v426, %v426
    %v459 = vpack.c.b16 %v427, %v427
    %v460 = vpack.c.b16 %v428, %v428
    %v461 = vpack.c.b16 %v429, %v429
    %v462 = vpack.c.b16 %v430, %v430
    %v463 = vpack.c.b16 %v431, %v431
    %v464 = vpack.c.b16 %v432, %v432
    %v465 = vpack.c.b16 %v433, %v433
    %v466 = vpack.c.b16 %v434, %v434
    %v467 = vpack.c.b16 %v435, %v435
    %v468 = vpack.c.b16 %v436, %v436
    %v469 = vpack.c.b16 %v437, %v437
    %v470 = vpack.c.b16 %v438, %v438
    %503 = vst [vmem:[#allocation2] sm:$0xf] %v439
    %504 = vst [vmem:[#allocation2 + $0x4] sm:$0xf] %v440
    %505 = vst [vmem:[#allocation2 + $0x8] sm:$0xf] %v441
    %506 = vst [vmem:[#allocation2 + $0xc] sm:$0xf] %v442
    %507 = vst [vmem:[#allocation2 + $0x10] sm:$0xf] %v443
    %508 = vst [vmem:[#allocation2 + $0x14] sm:$0xf] %v444
    %509 = vst [vmem:[#allocation2 + $0x18] sm:$0xf] %v445
    %510 = vst [vmem:[#allocation2 + $0x1c] sm:$0xf] %v446
    %511 = vst [vmem:[#allocation2 + $0x20] sm:$0xf] %v447
    %512 = vst [vmem:[#allocation2 + $0x24] sm:$0xf] %v448
    %513 = vst [vmem:[#allocation2 + $0x28] sm:$0xf] %v449
    %514 = vst [vmem:[#allocation2 + $0x2c] sm:$0xf] %v450
    %515 = vst [vmem:[#allocation2 + $0x30] sm:$0xf] %v451
    %516 = vst [vmem:[#allocation2 + $0x34] sm:$0xf] %v452
    %517 = vst [vmem:[#allocation2 + $0x38] sm:$0xf] %v453
    %518 = vst [vmem:[#allocation2 + $0x3c] sm:$0xf] %v454
    %519 = vst [vmem:[#allocation2 + $0x40] sm:$0xf] %v455
    %520 = vst [vmem:[#allocation2 + $0x44] sm:$0xf] %v456
    %521 = vst [vmem:[#allocation2 + $0x48] sm:$0xf] %v457
    %522 = vst [vmem:[#allocation2 + $0x4c] sm:$0xf] %v458
    %523 = vst [vmem:[#allocation2 + $0x50] sm:$0xf] %v459
    %524 = vst [vmem:[#allocation2 + $0x54] sm:$0xf] %v460
    %525 = vst [vmem:[#allocation2 + $0x58] sm:$0xf] %v461
    %526 = vst [vmem:[#allocation2 + $0x5c] sm:$0xf] %v462
    %527 = vst [vmem:[#allocation2 + $0x60] sm:$0xf] %v463
    %528 = vst [vmem:[#allocation2 + $0x64] sm:$0xf] %v464
    %529 = vst [vmem:[#allocation2 + $0x68] sm:$0xf] %v465
    %530 = vst [vmem:[#allocation2 + $0x6c] sm:$0xf] %v466
    %531 = vst [vmem:[#allocation2 + $0x70] sm:$0xf] %v467
    %532 = vst [vmem:[#allocation2 + $0x74] sm:$0xf] %v468
    %533 = vst [vmem:[#allocation2 + $0x78] sm:$0xf] %v469
    %534 = vst [vmem:[#allocation2 + $0x7c] sm:$0xf] %v470
  $region21: #{gcn_forward.1} parent=0 // pred_fallthru
    _
  %v535 = vld [vmem:[%s2] sm:$0xff]
  %v536 = vld [vmem:[%s2 + $0x8] sm:$0xff]
  %v537 = vld [vmem:[%s2 + $0x10] sm:$0xff]
  %v538 = vld [vmem:[%s2 + $0x18] sm:$0xff]
  %v539 = vld [vmem:[%s2 + $0x20] sm:$0xff]
  %v540 = vld [vmem:[%s2 + $0x28] sm:$0xff]
  %v541 = vld [vmem:[%s2 + $0x30] sm:$0xff]
  %v542 = vld [vmem:[%s2 + $0x38] sm:$0xff]
  %v543 = vld [vmem:[%s2 + $0x40] sm:$0xff]
  %v544 = vld [vmem:[%s2 + $0x48] sm:$0xff]
  %v545 = vld [vmem:[%s2 + $0x50] sm:$0xff]
  %v546 = vld [vmem:[%s2 + $0x58] sm:$0xff]
  %v547 = vld [vmem:[%s2 + $0x60] sm:$0xff]
  %v548 = vld [vmem:[%s2 + $0x68] sm:$0xff]
  %v549 = vld [vmem:[%s2 + $0x70] sm:$0xff]
  %v550 = vld [vmem:[%s2 + $0x78] sm:$0xff]
  %v551 = vld [vmem:[%s2 + $0x80] sm:$0xff]
  %v552 = vld [vmem:[%s2 + $0x88] sm:$0xff]
  %v553 = vld [vmem:[%s2 + $0x90] sm:$0xff]
  %v554 = vld [vmem:[%s2 + $0x98] sm:$0xff]
  %v555 = vld [vmem:[%s2 + $0xa0] sm:$0xff]
  %v556 = vld [vmem:[%s2 + $0xa8] sm:$0xff]
  %v557 = vld [vmem:[%s2 + $0xb0] sm:$0xff]
  %v558 = vld [vmem:[%s2 + $0xb8] sm:$0xff]
  %v559 = vld [vmem:[%s2 + $0xc0] sm:$0xff]
  %v560 = vld [vmem:[%s2 + $0xc8] sm:$0xff]
  %v561 = vld [vmem:[%s2 + $0xd0] sm:$0xff]
  %v562 = vld [vmem:[%s2 + $0xd8] sm:$0xff]
  %v563 = vld [vmem:[%s2 + $0xe0] sm:$0xff]
  %v564 = vld [vmem:[%s2 + $0xe8] sm:$0xff]
  %v565 = vld [vmem:[%s2 + $0xf0] sm:$0xff]
  %v566 = vld [vmem:[%s2 + $0xf8] sm:$0xff]
  %v567 = vld [vmem:[#allocation2] sm:$0xf]
  %v568 = vld [vmem:[#allocation2 + $0x4] sm:$0xf]
  %v569 = vld [vmem:[#allocation2 + $0x8] sm:$0xf]
  %v570 = vld [vmem:[#allocation2 + $0xc] sm:$0xf]
  %v571 = vld [vmem:[#allocation2 + $0x10] sm:$0xf]
  %v572 = vld [vmem:[#allocation2 + $0x14] sm:$0xf]
  %v573 = vld [vmem:[#allocation2 + $0x18] sm:$0xf]
  %v574 = vld [vmem:[#allocation2 + $0x1c] sm:$0xf]
  %v575 = vld [vmem:[#allocation2 + $0x20] sm:$0xf]
  %v576 = vld [vmem:[#allocation2 + $0x24] sm:$0xf]
  %v577 = vld [vmem:[#allocation2 + $0x28] sm:$0xf]
  %v578 = vld [vmem:[#allocation2 + $0x2c] sm:$0xf]
  %v579 = vld [vmem:[#allocation2 + $0x30] sm:$0xf]
  %v580 = vld [vmem:[#allocation2 + $0x34] sm:$0xf]
  %v581 = vld [vmem:[#allocation2 + $0x38] sm:$0xf]
  %v582 = vld [vmem:[#allocation2 + $0x3c] sm:$0xf]
  %v583 = vld [vmem:[#allocation2 + $0x40] sm:$0xf]
  %v584 = vld [vmem:[#allocation2 + $0x44] sm:$0xf]
  %v585 = vld [vmem:[#allocation2 + $0x48] sm:$0xf]
  %v586 = vld [vmem:[#allocation2 + $0x4c] sm:$0xf]
  %v587 = vld [vmem:[#allocation2 + $0x50] sm:$0xf]
  %v588 = vld [vmem:[#allocation2 + $0x54] sm:$0xf]
  %v589 = vld [vmem:[#allocation2 + $0x58] sm:$0xf]
  %v590 = vld [vmem:[#allocation2 + $0x5c] sm:$0xf]
  %v591 = vld [vmem:[#allocation2 + $0x60] sm:$0xf]
  %v592 = vld [vmem:[#allocation2 + $0x64] sm:$0xf]
  %v593 = vld [vmem:[#allocation2 + $0x68] sm:$0xf]
  %v594 = vld [vmem:[#allocation2 + $0x6c] sm:$0xf]
  %v595 = vld [vmem:[#allocation2 + $0x70] sm:$0xf]
  %v596 = vld [vmem:[#allocation2 + $0x74] sm:$0xf]
  %v597 = vld [vmem:[#allocation2 + $0x78] sm:$0xf]
  %v598 = vld [vmem:[#allocation2 + $0x7c] sm:$0xf]
  %v599 = vld [vmem:[%s3] sm:$0x1]
  %v601 = vlaneseq
  %v602 = vshrl.u32 %v601, 7
  %v603 = vsub.s32 0, %v602
  %v604 = vrot.slane %v599, %v603
  %v638 = vunpack.c.l.b16 %v535
  %v639 = vunpack.c.h.b16 %v535
  %v640 = vunpack.c.l.b16 %v536
  %v641 = vunpack.c.h.b16 %v536
  %v642 = vunpack.c.l.b16 %v537
  %v643 = vunpack.c.h.b16 %v537
  %v644 = vunpack.c.l.b16 %v538
  %v645 = vunpack.c.h.b16 %v538
  %v646 = vunpack.c.l.b16 %v539
  %v647 = vunpack.c.h.b16 %v539
  %v648 = vunpack.c.l.b16 %v540
  %v649 = vunpack.c.h.b16 %v540
  %v650 = vunpack.c.l.b16 %v541
  %v651 = vunpack.c.h.b16 %v541
  %v652 = vunpack.c.l.b16 %v542
  %v653 = vunpack.c.h.b16 %v542
  %v654 = vunpack.c.l.b16 %v543
  %v655 = vunpack.c.h.b16 %v543
  %v656 = vunpack.c.l.b16 %v544
  %v657 = vunpack.c.h.b16 %v544
  %v658 = vunpack.c.l.b16 %v545
  %v659 = vunpack.c.h.b16 %v545
  %v660 = vunpack.c.l.b16 %v546
  %v661 = vunpack.c.h.b16 %v546
  %v662 = vunpack.c.l.b16 %v547
  %v663 = vunpack.c.h.b16 %v547
  %v664 = vunpack.c.l.b16 %v548
  %v665 = vunpack.c.h.b16 %v548
  %v666 = vunpack.c.l.b16 %v549
  %v667 = vunpack.c.h.b16 %v549
  %v668 = vunpack.c.l.b16 %v550
  %v669 = vunpack.c.h.b16 %v550
  %v670 = vunpack.c.l.b16 %v551
  %v671 = vunpack.c.h.b16 %v551
  %v672 = vunpack.c.l.b16 %v552
  %v673 = vunpack.c.h.b16 %v552
  %v674 = vunpack.c.l.b16 %v553
  %v675 = vunpack.c.h.b16 %v553
  %v676 = vunpack.c.l.b16 %v554
  %v677 = vunpack.c.h.b16 %v554
  %v678 = vunpack.c.l.b16 %v555
  %v679 = vunpack.c.h.b16 %v555
  %v680 = vunpack.c.l.b16 %v556
  %v681 = vunpack.c.h.b16 %v556
  %v682 = vunpack.c.l.b16 %v557
  %v683 = vunpack.c.h.b16 %v557
  %v684 = vunpack.c.l.b16 %v558
  %v685 = vunpack.c.h.b16 %v558
  %v686 = vunpack.c.l.b16 %v559
  %v687 = vunpack.c.h.b16 %v559
  %v688 = vunpack.c.l.b16 %v560
  %v689 = vunpack.c.h.b16 %v560
  %v690 = vunpack.c.l.b16 %v561
  %v691 = vunpack.c.h.b16 %v561
  %v692 = vunpack.c.l.b16 %v562
  %v693 = vunpack.c.h.b16 %v562
  %v694 = vunpack.c.l.b16 %v563
  %v695 = vunpack.c.h.b16 %v563
  %v696 = vunpack.c.l.b16 %v564
  %v697 = vunpack.c.h.b16 %v564
  %v698 = vunpack.c.l.b16 %v565
  %v699 = vunpack.c.h.b16 %v565
  %v700 = vunpack.c.l.b16 %v566
  %v701 = vunpack.c.h.b16 %v566
  %v702 = vpack.c.b16 %v640, %v638
  %v703 = vpack.c.b16 %v641, %v639
  %v704 = vpack.c.b16 %v644, %v642
  %v705 = vpack.c.b16 %v645, %v643
  %v706 = vpack.c.b16 %v648, %v646
  %v707 = vpack.c.b16 %v649, %v647
  %v708 = vpack.c.b16 %v652, %v650
  %v709 = vpack.c.b16 %v653, %v651
  %v710 = vpack.c.b16 %v656, %v654
  %v711 = vpack.c.b16 %v657, %v655
  %v712 = vpack.c.b16 %v660, %v658
  %v713 = vpack.c.b16 %v661, %v659
  %v714 = vpack.c.b16 %v664, %v662
  %v715 = vpack.c.b16 %v665, %v663
  %v716 = vpack.c.b16 %v668, %v666
  %v717 = vpack.c.b16 %v669, %v667
  %v718 = vpack.c.b16 %v672, %v670
  %v719 = vpack.c.b16 %v673, %v671
  %v720 = vpack.c.b16 %v676, %v674
  %v721 = vpack.c.b16 %v677, %v675
  %v722 = vpack.c.b16 %v680, %v678
  %v723 = vpack.c.b16 %v681, %v679
  %v724 = vpack.c.b16 %v684, %v682
  %v725 = vpack.c.b16 %v685, %v683
  %v726 = vpack.c.b16 %v688, %v686
  %v727 = vpack.c.b16 %v689, %v687
  %v728 = vpack.c.b16 %v692, %v690
  %v729 = vpack.c.b16 %v693, %v691
  %v730 = vpack.c.b16 %v696, %v694
  %v731 = vpack.c.b16 %v697, %v695
  %v732 = vpack.c.b16 %v700, %v698
  %v733 = vpack.c.b16 %v701, %v699
  %v798 = vunpack.c.l.b16 %v567
  %v799 = vunpack.c.l.b16 %v568
  %v800 = vunpack.c.l.b16 %v569
  %v801 = vunpack.c.l.b16 %v570
  %v802 = vunpack.c.l.b16 %v571
  %v803 = vunpack.c.l.b16 %v572
  %v804 = vunpack.c.l.b16 %v573
  %v805 = vunpack.c.l.b16 %v574
  %v806 = vunpack.c.l.b16 %v575
  %v807 = vunpack.c.l.b16 %v576
  %v808 = vunpack.c.l.b16 %v577
  %v809 = vunpack.c.l.b16 %v578
  %v810 = vunpack.c.l.b16 %v579
  %v811 = vunpack.c.l.b16 %v580
  %v812 = vunpack.c.l.b16 %v581
  %v813 = vunpack.c.l.b16 %v582
  %v814 = vunpack.c.l.b16 %v583
  %v815 = vunpack.c.l.b16 %v584
  %v816 = vunpack.c.l.b16 %v585
  %v817 = vunpack.c.l.b16 %v586
  %v818 = vunpack.c.l.b16 %v587
  %v819 = vunpack.c.l.b16 %v588
  %v820 = vunpack.c.l.b16 %v589
  %v821 = vunpack.c.l.b16 %v590
  %v822 = vunpack.c.l.b16 %v591
  %v823 = vunpack.c.l.b16 %v592
  %v824 = vunpack.c.l.b16 %v593
  %v825 = vunpack.c.l.b16 %v594
  %v826 = vunpack.c.l.b16 %v595
  %v827 = vunpack.c.l.b16 %v596
  %v828 = vunpack.c.l.b16 %v597
  %v829 = vunpack.c.l.b16 %v598
  %v830 = vpack.c.b16 %v799, %v798
  %v831 = vpack.c.b16 %v801, %v800
  %v832 = vpack.c.b16 %v803, %v802
  %v833 = vpack.c.b16 %v805, %v804
  %v834 = vpack.c.b16 %v807, %v806
  %v835 = vpack.c.b16 %v809, %v808
  %v836 = vpack.c.b16 %v811, %v810
  %v837 = vpack.c.b16 %v813, %v812
  %v838 = vpack.c.b16 %v815, %v814
  %v839 = vpack.c.b16 %v817, %v816
  %v840 = vpack.c.b16 %v819, %v818
  %v841 = vpack.c.b16 %v821, %v820
  %v842 = vpack.c.b16 %v823, %v822
  %v843 = vpack.c.b16 %v825, %v824
  %v844 = vpack.c.b16 %v827, %v826
  %v845 = vpack.c.b16 %v829, %v828
  %862 = vmatprep.subr.bf16.mxu0 0
  %863 = vmatpush1.bf16.msra.mxu0 %v837
  %864 = vmatprep.subr.bf16.mxu0 0
  %865 = vmatpush1.bf16.msra.mxu0 %v836
  %866 = vmatprep.subr.bf16.mxu0 0
  %867 = vmatpush1.bf16.msra.mxu0 %v835
  %868 = vmatprep.subr.bf16.mxu0 0
  %869 = vmatpush1.bf16.msra.mxu0 %v834
  %870 = vmatprep.subr.bf16.mxu0 0
  %871 = vmatpush1.bf16.msra.mxu0 %v833
  %872 = vmatprep.subr.bf16.mxu0 0
  %873 = vmatpush1.bf16.msra.mxu0 %v832
  %874 = vmatprep.subr.bf16.mxu0 0
  %875 = vmatpush1.bf16.msra.mxu0 %v831
  %876 = vmatprep.subr.bf16.mxu0 0
  %877 = vmatpush1.bf16.msra.mxu0 %v830
  %878 = vmatprep.subr.bf16.mxu0 0
  %879 = vmatpush2.bf16.msra.mxu0 %v845
  %880 = vmatprep.subr.bf16.mxu0 0
  %881 = vmatpush2.bf16.msra.mxu0 %v844
  %882 = vmatprep.subr.bf16.mxu0 0
  %883 = vmatpush2.bf16.msra.mxu0 %v843
  %884 = vmatprep.subr.bf16.mxu0 0
  %885 = vmatpush2.bf16.msra.mxu0 %v842
  %886 = vmatprep.subr.bf16.mxu0 0
  %887 = vmatpush2.bf16.msra.mxu0 %v841
  %888 = vmatprep.subr.bf16.mxu0 0
  %889 = vmatpush2.bf16.msra.mxu0 %v840
  %890 = vmatprep.subr.bf16.mxu0 0
  %891 = vmatpush2.bf16.msra.mxu0 %v839
  %892 = vmatprep.subr.bf16.mxu0 0
  %893 = vmatpush2.bf16.msra.mxu0 %v838
  %894 = vmatprep.mubr.bf16.mxu0 %v703
  %895 = vmatmul.mubr.bf16.gmra.mxu0 %v702
  %v896 = vpop.f32.mrf.mxu0
  %v897 = vadd.f32 %v604, %v896
  %v898 = vpop.f32.mrf.mxu0
  %v899 = vpop.f32.mrf.mxu0
  %v900 = vadd.f32 %v604, %v899
  %v901 = vpop.f32.mrf.mxu0
  %902 = vmatprep.mubr.bf16.mxu0 %v705
  %903 = vmatmul.mubr.bf16.gmra.mxu0 %v704
  %v904 = vpop.f32.mrf.mxu0
  %v905 = vadd.f32 %v604, %v904
  %v906 = vpop.f32.mrf.mxu0
  %v907 = vpop.f32.mrf.mxu0
  %v908 = vadd.f32 %v604, %v907
  %v909 = vpop.f32.mrf.mxu0
  %910 = vmatprep.mubr.bf16.mxu0 %v707
  %911 = vmatmul.mubr.bf16.gmra.mxu0 %v706
  %v912 = vpop.f32.mrf.mxu0
  %v913 = vadd.f32 %v604, %v912
  %v914 = vpop.f32.mrf.mxu0
  %v915 = vpop.f32.mrf.mxu0
  %v916 = vadd.f32 %v604, %v915
  %v917 = vpop.f32.mrf.mxu0
  %918 = vmatprep.mubr.bf16.mxu0 %v709
  %919 = vmatmul.mubr.bf16.gmra.mxu0 %v708
  %v920 = vpop.f32.mrf.mxu0
  %v921 = vadd.f32 %v604, %v920
  %v922 = vpop.f32.mrf.mxu0
  %v923 = vpop.f32.mrf.mxu0
  %v924 = vadd.f32 %v604, %v923
  %v925 = vpop.f32.mrf.mxu0
  %926 = vmatprep.mubr.bf16.mxu0 %v711
  %927 = vmatmul.mubr.bf16.gmra.mxu0 %v710
  %v928 = vpop.f32.mrf.mxu0
  %v929 = vadd.f32 %v604, %v928
  %v930 = vpop.f32.mrf.mxu0
  %v931 = vpop.f32.mrf.mxu0
  %v932 = vadd.f32 %v604, %v931
  %v933 = vpop.f32.mrf.mxu0
  %934 = vmatprep.mubr.bf16.mxu0 %v713
  %935 = vmatmul.mubr.bf16.gmra.mxu0 %v712
  %v936 = vpop.f32.mrf.mxu0
  %v937 = vadd.f32 %v604, %v936
  %v938 = vpop.f32.mrf.mxu0
  %v939 = vpop.f32.mrf.mxu0
  %v940 = vadd.f32 %v604, %v939
  %v941 = vpop.f32.mrf.mxu0
  %942 = vmatprep.mubr.bf16.mxu0 %v715
  %943 = vmatmul.mubr.bf16.gmra.mxu0 %v714
  %v944 = vpop.f32.mrf.mxu0
  %v945 = vadd.f32 %v604, %v944
  %v946 = vpop.f32.mrf.mxu0
  %v947 = vpop.f32.mrf.mxu0
  %v948 = vadd.f32 %v604, %v947
  %v949 = vpop.f32.mrf.mxu0
  %950 = vmatprep.mubr.bf16.mxu0 %v717
  %951 = vmatmul.mubr.bf16.gmra.mxu0 %v716
  %v952 = vpop.f32.mrf.mxu0
  %v953 = vadd.f32 %v604, %v952
  %v954 = vpop.f32.mrf.mxu0
  %v955 = vpop.f32.mrf.mxu0
  %v956 = vadd.f32 %v604, %v955
  %v957 = vpop.f32.mrf.mxu0
  %958 = vmatprep.mubr.bf16.mxu0 %v719
  %959 = vmatmul.mubr.bf16.gmra.mxu0 %v718
  %v960 = vpop.f32.mrf.mxu0
  %v961 = vadd.f32 %v604, %v960
  %v962 = vpop.f32.mrf.mxu0
  %v963 = vpop.f32.mrf.mxu0
  %v964 = vadd.f32 %v604, %v963
  %v965 = vpop.f32.mrf.mxu0
  %966 = vmatprep.mubr.bf16.mxu0 %v721
  %967 = vmatmul.mubr.bf16.gmra.mxu0 %v720
  %v968 = vpop.f32.mrf.mxu0
  %v969 = vadd.f32 %v604, %v968
  %v970 = vpop.f32.mrf.mxu0
  %v971 = vpop.f32.mrf.mxu0
  %v972 = vadd.f32 %v604, %v971
  %v973 = vpop.f32.mrf.mxu0
  %974 = vmatprep.mubr.bf16.mxu0 %v723
  %975 = vmatmul.mubr.bf16.gmra.mxu0 %v722
  %v976 = vpop.f32.mrf.mxu0
  %v977 = vadd.f32 %v604, %v976
  %v978 = vpop.f32.mrf.mxu0
  %v979 = vpop.f32.mrf.mxu0
  %v980 = vadd.f32 %v604, %v979
  %v981 = vpop.f32.mrf.mxu0
  %982 = vmatprep.mubr.bf16.mxu0 %v725
  %983 = vmatmul.mubr.bf16.gmra.mxu0 %v724
  %v984 = vpop.f32.mrf.mxu0
  %v985 = vadd.f32 %v604, %v984
  %v986 = vpop.f32.mrf.mxu0
  %v987 = vpop.f32.mrf.mxu0
  %v988 = vadd.f32 %v604, %v987
  %v989 = vpop.f32.mrf.mxu0
  %990 = vmatprep.mubr.bf16.mxu0 %v727
  %991 = vmatmul.mubr.bf16.gmra.mxu0 %v726
  %v992 = vpop.f32.mrf.mxu0
  %v993 = vadd.f32 %v604, %v992
  %v994 = vpop.f32.mrf.mxu0
  %v995 = vpop.f32.mrf.mxu0
  %v996 = vadd.f32 %v604, %v995
  %v997 = vpop.f32.mrf.mxu0
  %998 = vmatprep.mubr.bf16.mxu0 %v729
  %999 = vmatmul.mubr.bf16.gmra.mxu0 %v728
  %v1000 = vpop.f32.mrf.mxu0
  %v1001 = vadd.f32 %v604, %v1000
  %v1002 = vpop.f32.mrf.mxu0
  %v1003 = vpop.f32.mrf.mxu0
  %v1004 = vadd.f32 %v604, %v1003
  %v1005 = vpop.f32.mrf.mxu0
  %1006 = vmatprep.mubr.bf16.mxu0 %v731
  %1007 = vmatmul.mubr.bf16.gmra.mxu0 %v730
  %v1008 = vpop.f32.mrf.mxu0
  %v1009 = vadd.f32 %v604, %v1008
  %v1010 = vpop.f32.mrf.mxu0
  %v1011 = vpop.f32.mrf.mxu0
  %v1012 = vadd.f32 %v604, %v1011
  %v1013 = vpop.f32.mrf.mxu0
  %1014 = vmatprep.mubr.bf16.mxu0 %v733
  %1015 = vmatmul.mubr.bf16.gmra.mxu0 %v732
  %v1016 = vpop.f32.mrf.mxu0
  %v1017 = vadd.f32 %v604, %v1016
  %v1018 = vpop.f32.mrf.mxu0
  %v1019 = vpop.f32.mrf.mxu0
  %v1020 = vadd.f32 %v604, %v1019
  %v1021 = vpop.f32.mrf.mxu0
  %1022 = vdwg.mxu0
  %1023 = vst [vmem:[%s4] sm:$0xff] %v897
  %1024 = vst [vmem:[%s4 + $0x8] sm:$0xff] %v900
  %1025 = vst [vmem:[%s4 + $0x10] sm:$0xff] %v905
  %1026 = vst [vmem:[%s4 + $0x18] sm:$0xff] %v908
  %1027 = vst [vmem:[%s4 + $0x20] sm:$0xff] %v913
  %1028 = vst [vmem:[%s4 + $0x28] sm:$0xff] %v916
  %1029 = vst [vmem:[%s4 + $0x30] sm:$0xff] %v921
  %1030 = vst [vmem:[%s4 + $0x38] sm:$0xff] %v924
  %1031 = vst [vmem:[%s4 + $0x40] sm:$0xff] %v929
  %1032 = vst [vmem:[%s4 + $0x48] sm:$0xff] %v932
  %1033 = vst [vmem:[%s4 + $0x50] sm:$0xff] %v937
  %1034 = vst [vmem:[%s4 + $0x58] sm:$0xff] %v940
  %1035 = vst [vmem:[%s4 + $0x60] sm:$0xff] %v945
  %1036 = vst [vmem:[%s4 + $0x68] sm:$0xff] %v948
  %1037 = vst [vmem:[%s4 + $0x70] sm:$0xff] %v953
  %1038 = vst [vmem:[%s4 + $0x78] sm:$0xff] %v956
  %1039 = vst [vmem:[%s4 + $0x80] sm:$0xff] %v961
  %1040 = vst [vmem:[%s4 + $0x88] sm:$0xff] %v964
  %1041 = vst [vmem:[%s4 + $0x90] sm:$0xff] %v969
  %1042 = vst [vmem:[%s4 + $0x98] sm:$0xff] %v972
  %1043 = vst [vmem:[%s4 + $0xa0] sm:$0xff] %v977
  %1044 = vst [vmem:[%s4 + $0xa8] sm:$0xff] %v980
  %1045 = vst [vmem:[%s4 + $0xb0] sm:$0xff] %v985
  %1046 = vst [vmem:[%s4 + $0xb8] sm:$0xff] %v988
  %1047 = vst [vmem:[%s4 + $0xc0] sm:$0xff] %v993
  %1048 = vst [vmem:[%s4 + $0xc8] sm:$0xff] %v996
  %1049 = vst [vmem:[%s4 + $0xd0] sm:$0xff] %v1001
  %1050 = vst [vmem:[%s4 + $0xd8] sm:$0xff] %v1004
  %1051 = vst [vmem:[%s4 + $0xe0] sm:$0xff] %v1009
  %1052 = vst [vmem:[%s4 + $0xe8] sm:$0xff] %v1012
  %1053 = vst [vmem:[%s4 + $0xf0] sm:$0xff] %v1017
  %1054 = vst [vmem:[%s4 + $0xf8] sm:$0xff] %v1020
  // Predicated region
  $region22: #{gcn_forward.1} parent=0 // pred_check
    _
  $region23: #{gcn_forward.1} parent=0 // pred_check_branch
    %1056 = sbr.rel (0) target = $region25
  $region24: #{gcn_forward.1} parent=0 // pred_region
    _
  $region25: #{gcn_forward.1} parent=0 // pred_fallthru
    _
  // Predicated region
  $region26: #{gcn_forward.1} parent=0 // pred_check
    _
  $region27: #{gcn_forward.1} parent=0 // pred_check_branch
    %1058 = sbr.rel (0) target = $region29
  $region28: #{gcn_forward.1} parent=0 // pred_region
    _
  $region29: #{gcn_forward.1} parent=0 // pred_fallthru
    _

</llo_original>
